<compile_context>
chip_gen: v7x
topology: tpu7x:2x2x1
jax: 0.10.0
libtpu: 0.0.40
codegen_flags: <defaults>
</compile_context>

<pallas_src>
import functools

import numpy as np
import jax
import jax.numpy as jnp
from jax.experimental import pallas as pl
from jax.experimental.pallas import tpu as pltpu

_BN_EPS = 1e-5
_LANE = 128
_C_LAST = 16          # classifier input channels (last ResLayer width)

# ----------------------------------------------------------------------------
# One-time probe: pin down pltpu.roll's rotation direction (hard error if the
# convention is unexpected -- never silently default).
# ----------------------------------------------------------------------------
_ROLL_SIGN = None


def _roll_sign():
    global _ROLL_SIGN
    if _ROLL_SIGN is None:
        def probe(x_ref, o_ref):
            o_ref[...] = pltpu.roll(x_ref[...], 1, axis=1)

        x = jnp.broadcast_to(
            jnp.arange(_LANE, dtype=jnp.float32)[None, :], (8, _LANE))
        out = pl.pallas_call(
            probe, out_shape=jax.ShapeDtypeStruct((8, _LANE), jnp.float32))(x)
        o00 = float(jax.device_get(out)[0, 0])
        if o00 == float(_LANE - 1):      # np.roll convention: y[p] = x[(p-s)%N]
            _ROLL_SIGN = 1
        elif o00 == 1.0:                 # opposite convention
            _ROLL_SIGN = -1
        else:
            raise RuntimeError(
                f"Unexpected pltpu.roll convention (probe returned {o00}).")
    return _ROLL_SIGN


def _pick_n_groups(batch):
    """v7x (2 TensorCores/chip): split batch across 2 grid steps ('parallel').
    Single-TC v5e/v6e: merge whole batch onto lanes, single grid step."""
    try:
        kind = jax.devices()[0].device_kind.lower()
    except Exception:
        kind = ""
    if "7" in kind and batch >= 2 and batch % 2 == 0:
        return 2
    return 1


# ----------------------------------------------------------------------------
# Fused kernel
# ----------------------------------------------------------------------------
def _make_fused_kernel(*, H, W, g_b, cp, residual, roll_sign):
    """Activations are (cp, g_b*H*W): channels on sublanes, batch*space on lanes."""
    HW = H * W
    LHW = g_b * HW
    n_layers = len(residual)

    def kernel(x_ref, w_ref, b_ref, m_ref, fcw_ref, fcb_ref, h_ref, logits_ref):
        # --- one 3x3 conv (+folded BN) as 9 accumulated small MXU matmuls ---
        def conv3x3(a16, c, relu):
            acc = None
            for t in range(9):
                dy, dx = divmod(t, 3)
                k = (dy - 1) * W + (dx - 1)
                if k == 0:
                    tap = a16                                  # center tap always valid
                else:
                    shift = ((-k) * roll_sign) % LHW
                    # bf16 roll + bf16 boundary mask (masks re-loaded from VMEM
                    # each tap -- not held live across the whole kernel).
                    tap = pltpu.roll(a16, shift, axis=1) * m_ref[t]
                part = jnp.dot(w_ref[c * 9 + t], tap,
                               preferred_element_type=jnp.float32)
                acc = part if acc is None else acc + part
            acc = acc + b_ref[c]                               # folded BN bias (cp,1)
            if relu:
                acc = jnp.maximum(acc, 0.0)
            return acc

        a = x_ref[...].astype(jnp.float32)                     # (cp, LHW)
        for li in range(n_layers):
            h1 = conv3x3(a.astype(jnp.bfloat16), 2 * li, relu=True)       # c1
            h2 = conv3x3(h1.astype(jnp.bfloat16), 2 * li + 1, relu=False)  # c2
            if residual[li]:                                   # channels matched
                h2 = h2 + a
            a = jnp.maximum(h2, 0.0)                           # ResLayer ReLU

        h_ref[...] = a.astype(h_ref.dtype)                     # lane-dense store

        # --- AdaptiveAvgPool2d(1) + Linear, lane-dense (g_b, OPAD) output ---
        inv_hw = 1.0 / HW
        rows = []
        for g in range(g_b):
            pooled_g = jnp.sum(a[:, g * HW:(g + 1) * HW], axis=1,
                               keepdims=True) * inv_hw          # (cp, 1) f32
            row = jnp.sum(pooled_g * fcw_ref[...], axis=0,
                          keepdims=True) + fcb_ref[...]         # (1, OPAD)
            rows.append(row)
        logits = rows[0] if g_b == 1 else jnp.concatenate(rows, axis=0)
        logits_ref[...] = logits.astype(logits_ref.dtype)

    return kernel


# ----------------------------------------------------------------------------
# Parameters (deterministic; BN folded in inference mode; packed slab layout)
# ----------------------------------------------------------------------------
def _make_conv_bn_params(key, cin, cout):
    k = jax.random.split(key, 6)
    w = jax.random.normal(k[0], (3, 3, cin, cout), jnp.float32) / np.sqrt(9.0 * cin)
    conv_b = 0.1 * jax.random.normal(k[1], (cout,), jnp.float32)
    gamma = 1.0 + 0.1 * jax.random.normal(k[2], (cout,), jnp.float32)
    beta = 0.1 * jax.random.normal(k[3], (cout,), jnp.float32)
    mean = 0.1 * jax.random.normal(k[4], (cout,), jnp.float32)
    var = 0.9 + 0.1 * jnp.abs(jax.random.normal(k[5], (cout,), jnp.float32))
    scale = gamma / jnp.sqrt(var + _BN_EPS)                     # (cout,)
    w_f = w * scale                                             # fold BN into conv
    b_f = beta + (conv_b - mean) * scale
    # Per-tap layout: (9, cout, cin) with t = dy*3 + dx.
    w9 = jnp.transpose(w_f.reshape(9, cin, cout), (0, 2, 1))
    return np.asarray(w9, np.float32), np.asarray(b_f, np.float32)


def init_device_model_params(key, in_channels, out_channels):
    plan = [(in_channels, 8), (8, 8), (8, 16), (16, 16), (16, 16)]
    cp = max(16, ((in_channels + 7) // 8) * 8)                  # uniform padded width
    convs = []
    for cin, cout in plan:
        convs.append((cin, cout))                               # c1 (conv+BN+ReLU)
        convs.append((cout, cout))                              # c2 (conv+BN)
    n_convs = len(convs)

    w_slab = np.zeros((n_convs * 9, cp, cp), np.float32)
    b_slab = np.zeros((n_convs, cp, 1), np.float32)
    for ci, (cin, cout) in enumerate(convs):
        key, sub = jax.random.split(key)
        w9, bf = _make_conv_bn_params(sub, cin, cout)
        w_slab[ci * 9:(ci + 1) * 9, :cout, :cin] = w9
        b_slab[ci, :cout, 0] = bf

    key, kw, kb = jax.random.split(key, 3)
    fc_w = jax.random.normal(kw, (_C_LAST, out_channels), jnp.float32) / np.sqrt(float(_C_LAST))
    fc_b = 0.1 * jax.random.normal(kb, (out_channels,), jnp.float32)
    opad = ((out_channels + _LANE - 1) // _LANE) * _LANE        # pad classes to 128 lanes
    fcw = np.zeros((cp, opad), np.float32)
    fcw[:_C_LAST, :out_channels] = np.asarray(fc_w)
    fcb = np.zeros((1, opad), np.float32)
    fcb[0, :out_channels] = np.asarray(fc_b)

    return {
        "w": jnp.asarray(w_slab, jnp.bfloat16),                 # (90, cp, cp) bf16
        "b": jnp.asarray(b_slab, jnp.float32),                  # (10, cp, 1)  f32
        "fcw": jnp.asarray(fcw, jnp.float32),                   # (cp, opad)   f32
        "fcb": jnp.asarray(fcb, jnp.float32),                   # (1, opad)    f32
        "residual": tuple(cin == cout for cin, cout in plan),   # static metadata
    }


# ----------------------------------------------------------------------------
# Forward pass (matches DeviceModel.forward: returns (feature map, logits))
# ----------------------------------------------------------------------------
@functools.partial(jax.jit,
                   static_argnames=("num_classes", "residual", "n_groups", "roll_sign"))
def _forward_impl(x, params, *, num_classes, residual, n_groups, roll_sign):
    B, C0, H, W = x.shape
    assert B % n_groups == 0
    G_B = B // n_groups
    HW = H * W
    LHW = G_B * HW
    CP, OPAD = params["fcw"].shape

    # ---- pack input: (B,C0,H,W) -> (n_groups, CP, G_B*HW), channel-padded ----
    xg = x.astype(jnp.float32).reshape(n_groups, G_B, C0, HW)
    xg = jnp.transpose(xg, (0, 2, 1, 3)).reshape(n_groups, C0, LHW)
    if C0 < CP:
        xg = jnp.pad(xg, ((0, 0), (0, CP - C0), (0, 0)))

    # ---- zero-padding boundary masks for the 9 taps (compile-time, bf16) ----
    ys, xs = np.meshgrid(np.arange(H), np.arange(W), indexing="ij")
    masks_np = np.zeros((9, 1, LHW), np.float32)
    for dy in range(3):
        for dx in range(3):
            valid = ((ys + dy - 1 >= 0) & (ys + dy - 1 < H)
                     & (xs + dx - 1 >= 0) & (xs + dx - 1 < W)).reshape(-1)
            masks_np[dy * 3 + dx, 0] = np.tile(valid.astype(np.float32), G_B)
    masks = jnp.asarray(masks_np, jnp.bfloat16)

    kernel = _make_fused_kernel(H=H, W=W, g_b=G_B, cp=CP,
                                residual=residual, roll_sign=roll_sign)

    def bcast(arr):
        return pl.BlockSpec(arr.shape, lambda g, nd=arr.ndim: (0,) * nd)

    h_pack, logits_pack = pl.pallas_call(
        kernel,
        grid=(n_groups,),
        in_specs=[pl.BlockSpec((None, CP, LHW), lambda g: (g, 0, 0)),
                  bcast(params["w"]), bcast(params["b"]), bcast(masks),
                  bcast(params["fcw"]), bcast(params["fcb"])],
        out_specs=[pl.BlockSpec((None, CP, LHW), lambda g: (g, 0, 0)),
                   pl.BlockSpec((None, G_B, OPAD), lambda g: (g, 0, 0))],
        out_shape=[jax.ShapeDtypeStruct((n_groups, CP, LHW), jnp.float32),
                   jax.ShapeDtypeStruct((n_groups, G_B, OPAD), jnp.float32)],
        compiler_params=pltpu.CompilerParams(dimension_semantics=("parallel",)),
    )(xg, params["w"], params["b"], masks, params["fcw"], params["fcb"])

    # ---- unpack: feature map back to NCHW, logits to (B, num_classes) ----
    h = h_pack.reshape(n_groups, CP, G_B, H, W)
    h = jnp.transpose(h, (0, 2, 1, 3, 4)).reshape(B, CP, H, W)[:, :_C_LAST]
    logits = logits_pack.reshape(B, OPAD)[:, :num_classes]
    return h, logits


def device_model_forward(x, params, num_classes):
    arrays = {k: v for k, v in params.items() if k != "residual"}
    return _forward_impl(x, arrays,
                         num_classes=num_classes,
                         residual=params["residual"],
                         n_groups=_pick_n_groups(x.shape[0]),
                         roll_sign=_roll_sign())


# ----------------------------------------------------------------------------
# Main
# ----------------------------------------------------------------------------
if __name__ == "__main__":
    B, C_IN, H, W = 2, 4, 16, 16
    OUT_CLASSES = 10

    key = jax.random.PRNGKey(0)
    key, kx, kp = jax.random.split(key, 3)
    x = jax.random.normal(kx, (B, C_IN, H, W), jnp.float32)      # NCHW, as in PyTorch
    params = init_device_model_params(kp, C_IN, OUT_CLASSES)

    h, logits = device_model_forward(x, params, OUT_CLASSES)
    jax.block_until_ready((h, logits))

    assert h.shape == (B, 16, H, W)
    assert logits.shape == (B, OUT_CLASSES)
    print("KERNEL_OK")
</pallas_src>

<mosaic_0001>
module attributes {stable_mosaic.version = 11 : i64} {
  func.func @probe(%arg0: memref<8x128xf32, #tpu.memory_space<vmem>>, %arg1: memref<8x128xf32, #tpu.memory_space<vmem>>) attributes {dimension_semantics = [], scalar_prefetch = 0 : i64, scratch_operands = 0 : i64, tpu.core_type = #tpu.core_type<tc>} {
    %c0 = arith.constant 0 : index
    %c0_0 = arith.constant 0 : index
    %0 = vector.load %arg0[%c0, %c0_0] : memref<8x128xf32, #tpu.memory_space<vmem>>, vector<8x128xf32>
    %c1_i32 = arith.constant 1 : i32
    %1 = tpu.dynamic_rotate %0 by %c1_i32 dim 1 : vector<8x128xf32>, i32 -> vector<8x128xf32>
    %c0_1 = arith.constant 0 : index
    %c0_2 = arith.constant 0 : index
    %2 = vector.load %arg1[%c0_1, %c0_2] : memref<8x128xf32, #tpu.memory_space<vmem>>, vector<8x128xf32>
    tpu.vector_store %arg1[%c0_1, %c0_2], %1 {strides = array<i32>} : memref<8x128xf32, #tpu.memory_space<vmem>>, vector<8x128xf32>,
    return
  }
}

</mosaic_0001>

<llo_original>
// kernel: tpu_custom_call.1
$region0: #{tpu_custom_call.1}
  #allocation0 [shape = 'u32[]', space=smem, size = 0x4, offset = 0x4, fixed_abs, tag = 'smem constant byte address 0x4 - core index']
  #allocation1 [shape = 'u32[144,128]{1,0:T(1,128)}', space=vmem, size = 0x12000, scoped, tag = 'internal scratch']
  %s0 = inlined_call_operand.hbm [shape: f32[8,128], index: 0, kind: input, shape index: {}]
  %s1 = inlined_call_operand.hbm [shape: f32[8,128], index: 1, kind: output, shape index: {}]
  %s2 = sld [smem:[#allocation0]]
  $region18: #{tpu_custom_call.1} parent=0
    _
  %s4 = ssub.s32 1, %s2
  %s5 = scalar_select 0, %s4, %s2
  $region1: #{tpu_custom_call.1} parent=0
    #allocation2 [shape = 'u8[4096]{0}', space=vmem, size = 0x1000, scoped, tag = 'input window, operand 0, single buffered']
    #allocation3 [shape = 's32[1]{0}', space=sflag, size = 0x4, scoped, tag = 'scoped memory for tpu_custom_call.1']
    #allocation4 [shape = 's32[1]{0}', space=sflag, size = 0x4, scoped, tag = 'scoped memory for tpu_custom_call.1']
    #allocation5 [shape = 'u8[4096]{0}', space=vmem, size = 0x1000, scoped, tag = 'output window, operand 0, single buffered']
    %6 = vsyncpa [#allocation3], 0
    %7 = vsyncpa [#allocation4], 0
    // Predicated region
    $region2: #{tpu_custom_call.1} parent=1 // pred_check
      _
    $region3: #{tpu_custom_call.1} parent=1 // pred_check_branch
      %9 = sbr.rel (0) target = $region5
    $region4: #{tpu_custom_call.1} parent=1 // pred_region
      %s11 = ssub.s32 128, 128
      %12 = vsyncadd [#allocation3], %s11
      %s14 = sshll.u32 [#allocation2], 4
      %s15 = int_to_ptr.vmem [resolvable:$true] %s14
      %17 = dma.hbm_to_vmem [thread:$0]  %s0, 128, %s15, [#allocation3]
    $region5: #{tpu_custom_call.1} parent=1 // pred_fallthru
      _
    // Predicated region
    $region6: #{tpu_custom_call.1} parent=1 // pred_check
      _
    $region7: #{tpu_custom_call.1} parent=1 // pred_check_branch
      %19 = sbr.rel (0) target = $region9
    $region8: #{tpu_custom_call.1} parent=1 // pred_region
      %20 = dma.done [#allocation3], 128
    $region9: #{tpu_custom_call.1} parent=1 // pred_fallthru
      _
    %v21 = vld [vmem:[#allocation2] sm:$0xff]
    %22 = vrot.lane.b32.xlu0 %v21, 1
    %v23 = vpop.permute.xlu0 %22
    %24 = vst [vmem:[#allocation5] sm:$0xff] %v23
    // Predicated region
    $region10: #{tpu_custom_call.1} parent=1 // pred_check
      _
    $region11: #{tpu_custom_call.1} parent=1 // pred_check_branch
      %26 = sbr.rel (0) target = $region13
    $region12: #{tpu_custom_call.1} parent=1 // pred_region
      %s28 = ssub.s32 128, 128
      %29 = vsyncadd [#allocation4], %s28
      %s31 = sshll.u32 [#allocation5], 4
      %s32 = int_to_ptr.vmem [resolvable:$true] %s31
      %34 = dma.vmem_to_hbm [thread:$0]  %s32, 128, %s1, [#allocation4]
    $region13: #{tpu_custom_call.1} parent=1 // pred_fallthru
      _
    // Predicated region
    $region14: #{tpu_custom_call.1} parent=1 // pred_check
      _
    $region15: #{tpu_custom_call.1} parent=1 // pred_check_branch
      %36 = sbr.rel (0) target = $region17
    $region16: #{tpu_custom_call.1} parent=1 // pred_region
      %37 = dma.done [#allocation4], 128
    $region17: #{tpu_custom_call.1} parent=1 // pred_fallthru
      _
    %38 = vsyncpa [#allocation3], 1
    %39 = vsyncpa [#allocation4], 1

</llo_original>
